<compile_context>
chip_gen: v5e
topology: v5e:2x2
jax: 0.10.0
libtpu: 0.0.40
codegen_flags: <defaults>
</compile_context>

<pallas_src>
import functools

import jax
import jax.numpy as jnp
from jax import lax
from jax.experimental import pallas as pl
from jax.experimental.pallas import tpu as pltpu


def lstm_recurrence_kernel(xg_ref, wh_ref, h_ref):
    """Sequential LSTM recurrence over precomputed input gates.

    xg_ref : (S, B, 4H) f32   xgates[t] = x_t @ W_ih^T + b_ih + b_hh  (time-major)
    wh_ref : (H, 4H)    f32   hidden->gates weights (transposed, gate order i,f,g,o)
    h_ref  : (B, H)     f32   output: final hidden state h_n
    """
    S, B, _ = xg_ref.shape
    H = wh_ref.shape[0]

    wh = wh_ref[...]  # resident in vregs/VMEM across all steps

    def step(t, carry):
        h_prev, c_prev = carry
        # Only h @ Wh sits on the latency-critical sequential path.
        gates = xg_ref[t] + jnp.dot(h_prev, wh,
                                    preferred_element_type=jnp.float32)
        i_g = jax.nn.sigmoid(gates[:, 0 * H:1 * H])
        f_g = jax.nn.sigmoid(gates[:, 1 * H:2 * H])
        g_g = jnp.tanh(gates[:, 2 * H:3 * H])
        o_g = jax.nn.sigmoid(gates[:, 3 * H:4 * H])
        c_new = f_g * c_prev + i_g * g_g
        h_new = o_g * jnp.tanh(c_new)
        return (h_new, c_new)

    h0 = jnp.zeros((B, H), jnp.float32)
    c0 = jnp.zeros((B, H), jnp.float32)
    # Fully unrolled: short fixed trip count -> lets the LLO scheduler overlap
    # consecutive steps' MXU/VPU/EUP work instead of paying per-step loop overhead.
    h_n, _ = lax.fori_loop(0, S, step, (h0, c0), unroll=True)
    h_ref[...] = h_n


@jax.jit
def lstm_model_forward(x, w_ih, w_hh, b_ih, b_hh, w_fc, b_fc):
    """Equivalent of LSTMModel.forward: fc(h_n[-1]) for a 1-layer batch_first LSTM.

    x    : (B, S, D_in) float32
    w_ih : (4H, D_in)   PyTorch lstm.weight_ih_l0   (gate order i, f, g, o)
    w_hh : (4H, H)      PyTorch lstm.weight_hh_l0
    b_ih : (4H,)        PyTorch lstm.bias_ih_l0
    b_hh : (4H,)        PyTorch lstm.bias_hh_l0
    w_fc : (D_out, H)   PyTorch fc.weight
    b_fc : (D_out,)     PyTorch fc.bias
    """
    B, S, _ = x.shape
    four_h = w_ih.shape[0]
    H = four_h // 4

    # Hoisted, non-recurrent input projection for all timesteps as one matmul.
    # Output is time-major (S, B, 4H) so the kernel can index the leading axis;
    # no separate HBM relayout pass over x is issued (fused into the contraction).
    xg = jnp.einsum('bsd,gd->sbg', x, w_ih,
                    preferred_element_type=jnp.float32) + (b_ih + b_hh)
    wh = jnp.transpose(w_hh, (1, 0))                       # (H, 4H)

    h_n = pl.pallas_call(
        lstm_recurrence_kernel,
        out_shape=jax.ShapeDtypeStruct((B, H), jnp.float32),
        in_specs=[
            pl.BlockSpec(memory_space=pltpu.MemorySpace.VMEM),  # xg, whole array
            pl.BlockSpec(memory_space=pltpu.MemorySpace.VMEM),  # wh, whole array
        ],
        out_specs=pl.BlockSpec(memory_space=pltpu.MemorySpace.VMEM),
    )(xg, wh)

    # Final linear layer outside the kernel (weights used once -> plain XLA matmul).
    return h_n @ jnp.transpose(w_fc, (1, 0)) + b_fc


def lstm_model_reference(x, w_ih, w_hh, b_ih, b_hh, w_fc, b_fc):
    """Pure-JAX reference matching torch.nn.LSTM (1 layer) + Linear."""
    B, S, _ = x.shape
    H = w_hh.shape[1]

    def step(carry, x_t):
        h, c = carry
        gates = x_t @ w_ih.T + b_ih + h @ w_hh.T + b_hh
        i_g = jax.nn.sigmoid(gates[:, 0 * H:1 * H])
        f_g = jax.nn.sigmoid(gates[:, 1 * H:2 * H])
        g_g = jnp.tanh(gates[:, 2 * H:3 * H])
        o_g = jax.nn.sigmoid(gates[:, 3 * H:4 * H])
        c = f_g * c + i_g * g_g
        h = o_g * jnp.tanh(c)
        return (h, c), None

    h0 = jnp.zeros((B, H), jnp.float32)
    c0 = jnp.zeros((B, H), jnp.float32)
    (h_n, _), _ = jax.lax.scan(step, (h0, c0), jnp.transpose(x, (1, 0, 2)))
    return h_n @ w_fc.T + b_fc


if __name__ == "__main__":
    # Small shapes consistent with the module: batch=8, seq=8, input_dim=16,
    # hidden_dim=32, output_dim=8.
    B, S, D_IN, H, D_OUT = 8, 8, 16, 32, 8

    key = jax.random.PRNGKey(0)
    k = jax.random.split(key, 8)
    scale = 1.0 / jnp.sqrt(H)  # PyTorch default init range for LSTM / Linear

    x = jax.random.normal(k[0], (B, S, D_IN), jnp.float32)
    w_ih = jax.random.uniform(k[1], (4 * H, D_IN), jnp.float32, -scale, scale)
    w_hh = jax.random.uniform(k[2], (4 * H, H), jnp.float32, -scale, scale)
    b_ih = jax.random.uniform(k[3], (4 * H,), jnp.float32, -scale, scale)
    b_hh = jax.random.uniform(k[4], (4 * H,), jnp.float32, -scale, scale)
    w_fc = jax.random.uniform(k[5], (D_OUT, H), jnp.float32, -scale, scale)
    b_fc = jax.random.uniform(k[6], (D_OUT,), jnp.float32, -scale, scale)

    out = lstm_model_forward(x, w_ih, w_hh, b_ih, b_hh, w_fc, b_fc)
    out = jax.block_until_ready(out)

    ref = lstm_model_reference(x, w_ih, w_hh, b_ih, b_hh, w_fc, b_fc)
    assert out.shape == (B, D_OUT)
    assert jnp.allclose(out, ref, atol=1e-5, rtol=1e-5), "mismatch vs reference"

    print("KERNEL_OK")
</pallas_src>

<mosaic_0001>
module attributes {stable_mosaic.version = 11 : i64} {
  func.func @lstm_recurrence_kernel(%arg0: memref<8x8x128xf32, #tpu.memory_space<vmem>>, %arg1: memref<32x128xf32, #tpu.memory_space<vmem>>, %arg2: memref<8x32xf32, #tpu.memory_space<vmem>>) attributes {dimension_semantics = [], scalar_prefetch = 0 : i64, scratch_operands = 0 : i64, tpu.core_type = #tpu.core_type<tc>} {
    %c0 = arith.constant 0 : index
    %c0_0 = arith.constant 0 : index
    %0 = vector.load %arg1[%c0, %c0_0] : memref<32x128xf32, #tpu.memory_space<vmem>>, vector<32x128xf32>
    %cst = arith.constant 0.000000e+00 : f32
    %1 = vector.broadcast %cst : f32 to vector<8x32xf32>
    %cst_1 = arith.constant 0.000000e+00 : f32
    %2 = vector.broadcast %cst_1 : f32 to vector<8x32xf32>
    %c0_i32 = arith.constant 0 : i32
    %3 = arith.index_cast %c0_i32 : i32 to index
    %c0_2 = arith.constant 0 : index
    %c0_3 = arith.constant 0 : index
    %4 = vector.load %arg0[%3, %c0_2, %c0_3] : memref<8x8x128xf32, #tpu.memory_space<vmem>>, vector<1x8x128xf32>
    %5 = vector.shape_cast %4 : vector<1x8x128xf32> to vector<8x128xf32>
    %cst_4 = arith.constant dense<0.000000e+00> : vector<8x128xf32>
    %6 = tpu.matmul %1, %0, %cst_4 {dimension_numbers = #tpu.dot_dimension_numbers<[1], [0], [0], [1], [0, 0, 1, 1], [], []>} : vector<8x32xf32>, vector<32x128xf32>, vector<8x128xf32> -> vector<8x128xf32>
    %7 = arith.addf %5, %6 : vector<8x128xf32>
    %8 = vector.extract_strided_slice %7 {offsets = [0, 0], sizes = [8, 32], strides = [1, 1]} : vector<8x128xf32> to vector<8x32xf32>
    %9 = arith.negf %8 : vector<8x32xf32>
    %10 = math.exp %9 : vector<8x32xf32>
    %cst_5 = arith.constant 1.000000e+00 : f32
    %11 = vector.broadcast %cst_5 : f32 to vector<8x32xf32>
    %12 = arith.addf %11, %10 : vector<8x32xf32>
    %13 = arith.divf %11, %12 : vector<8x32xf32>
    %14 = vector.extract_strided_slice %7 {offsets = [0, 32], sizes = [8, 32], strides = [1, 1]} : vector<8x128xf32> to vector<8x32xf32>
    %15 = arith.negf %14 : vector<8x32xf32>
    %16 = math.exp %15 : vector<8x32xf32>
    %cst_6 = arith.constant 1.000000e+00 : f32
    %17 = vector.broadcast %cst_6 : f32 to vector<8x32xf32>
    %18 = arith.addf %17, %16 : vector<8x32xf32>
    %19 = arith.divf %17, %18 : vector<8x32xf32>
    %20 = vector.extract_strided_slice %7 {offsets = [0, 64], sizes = [8, 32], strides = [1, 1]} : vector<8x128xf32> to vector<8x32xf32>
    %21 = math.tanh %20 : vector<8x32xf32>
    %22 = vector.extract_strided_slice %7 {offsets = [0, 96], sizes = [8, 32], strides = [1, 1]} : vector<8x128xf32> to vector<8x32xf32>
    %23 = arith.negf %22 : vector<8x32xf32>
    %24 = math.exp %23 : vector<8x32xf32>
    %cst_7 = arith.constant 1.000000e+00 : f32
    %25 = vector.broadcast %cst_7 : f32 to vector<8x32xf32>
    %26 = arith.addf %25, %24 : vector<8x32xf32>
    %27 = arith.divf %25, %26 : vector<8x32xf32>
    %28 = arith.mulf %19, %2 : vector<8x32xf32>
    %29 = arith.mulf %13, %21 : vector<8x32xf32>
    %30 = arith.addf %28, %29 : vector<8x32xf32>
    %31 = math.tanh %30 : vector<8x32xf32>
    %32 = arith.mulf %27, %31 : vector<8x32xf32>
    %c1_i32 = arith.constant 1 : i32
    %33 = arith.index_cast %c1_i32 : i32 to index
    %c0_8 = arith.constant 0 : index
    %c0_9 = arith.constant 0 : index
    %34 = vector.load %arg0[%33, %c0_8, %c0_9] : memref<8x8x128xf32, #tpu.memory_space<vmem>>, vector<1x8x128xf32>
    %35 = vector.shape_cast %34 : vector<1x8x128xf32> to vector<8x128xf32>
    %cst_10 = arith.constant dense<0.000000e+00> : vector<8x128xf32>
    %36 = tpu.matmul %32, %0, %cst_10 {dimension_numbers = #tpu.dot_dimension_numbers<[1], [0], [0], [1], [0, 0, 1, 1], [], []>} : vector<8x32xf32>, vector<32x128xf32>, vector<8x128xf32> -> vector<8x128xf32>
    %37 = arith.addf %35, %36 : vector<8x128xf32>
    %38 = vector.extract_strided_slice %37 {offsets = [0, 0], sizes = [8, 32], strides = [1, 1]} : vector<8x128xf32> to vector<8x32xf32>
    %39 = arith.negf %38 : vector<8x32xf32>
    %40 = math.exp %39 : vector<8x32xf32>
    %cst_11 = arith.constant 1.000000e+00 : f32
    %41 = vector.broadcast %cst_11 : f32 to vector<8x32xf32>
    %42 = arith.addf %41, %40 : vector<8x32xf32>
    %43 = arith.divf %41, %42 : vector<8x32xf32>
    %44 = vector.extract_strided_slice %37 {offsets = [0, 32], sizes = [8, 32], strides = [1, 1]} : vector<8x128xf32> to vector<8x32xf32>
    %45 = arith.negf %44 : vector<8x32xf32>
    %46 = math.exp %45 : vector<8x32xf32>
    %cst_12 = arith.constant 1.000000e+00 : f32
    %47 = vector.broadcast %cst_12 : f32 to vector<8x32xf32>
    %48 = arith.addf %47, %46 : vector<8x32xf32>
    %49 = arith.divf %47, %48 : vector<8x32xf32>
    %50 = vector.extract_strided_slice %37 {offsets = [0, 64], sizes = [8, 32], strides = [1, 1]} : vector<8x128xf32> to vector<8x32xf32>
    %51 = math.tanh %50 : vector<8x32xf32>
    %52 = vector.extract_strided_slice %37 {offsets = [0, 96], sizes = [8, 32], strides = [1, 1]} : vector<8x128xf32> to vector<8x32xf32>
    %53 = arith.negf %52 : vector<8x32xf32>
    %54 = math.exp %53 : vector<8x32xf32>
    %cst_13 = arith.constant 1.000000e+00 : f32
    %55 = vector.broadcast %cst_13 : f32 to vector<8x32xf32>
    %56 = arith.addf %55, %54 : vector<8x32xf32>
    %57 = arith.divf %55, %56 : vector<8x32xf32>
    %58 = arith.mulf %49, %30 : vector<8x32xf32>
    %59 = arith.mulf %43, %51 : vector<8x32xf32>
    %60 = arith.addf %58, %59 : vector<8x32xf32>
    %61 = math.tanh %60 : vector<8x32xf32>
    %62 = arith.mulf %57, %61 : vector<8x32xf32>
    %c2_i32 = arith.constant 2 : i32
    %63 = arith.index_cast %c2_i32 : i32 to index
    %c0_14 = arith.constant 0 : index
    %c0_15 = arith.constant 0 : index
    %64 = vector.load %arg0[%63, %c0_14, %c0_15] : memref<8x8x128xf32, #tpu.memory_space<vmem>>, vector<1x8x128xf32>
    %65 = vector.shape_cast %64 : vector<1x8x128xf32> to vector<8x128xf32>
    %cst_16 = arith.constant dense<0.000000e+00> : vector<8x128xf32>
    %66 = tpu.matmul %62, %0, %cst_16 {dimension_numbers = #tpu.dot_dimension_numbers<[1], [0], [0], [1], [0, 0, 1, 1], [], []>} : vector<8x32xf32>, vector<32x128xf32>, vector<8x128xf32> -> vector<8x128xf32>
    %67 = arith.addf %65, %66 : vector<8x128xf32>
    %68 = vector.extract_strided_slice %67 {offsets = [0, 0], sizes = [8, 32], strides = [1, 1]} : vector<8x128xf32> to vector<8x32xf32>
    %69 = arith.negf %68 : vector<8x32xf32>
    %70 = math.exp %69 : vector<8x32xf32>
    %cst_17 = arith.constant 1.000000e+00 : f32
    %71 = vector.broadcast %cst_17 : f32 to vector<8x32xf32>
    %72 = arith.addf %71, %70 : vector<8x32xf32>
    %73 = arith.divf %71, %72 : vector<8x32xf32>
    %74 = vector.extract_strided_slice %67 {offsets = [0, 32], sizes = [8, 32], strides = [1, 1]} : vector<8x128xf32> to vector<8x32xf32>
    %75 = arith.negf %74 : vector<8x32xf32>
    %76 = math.exp %75 : vector<8x32xf32>
    %cst_18 = arith.constant 1.000000e+00 : f32
    %77 = vector.broadcast %cst_18 : f32 to vector<8x32xf32>
    %78 = arith.addf %77, %76 : vector<8x32xf32>
    %79 = arith.divf %77, %78 : vector<8x32xf32>
    %80 = vector.extract_strided_slice %67 {offsets = [0, 64], sizes = [8, 32], strides = [1, 1]} : vector<8x128xf32> to vector<8x32xf32>
    %81 = math.tanh %80 : vector<8x32xf32>
    %82 = vector.extract_strided_slice %67 {offsets = [0, 96], sizes = [8, 32], strides = [1, 1]} : vector<8x128xf32> to vector<8x32xf32>
    %83 = arith.negf %82 : vector<8x32xf32>
    %84 = math.exp %83 : vector<8x32xf32>
    %cst_19 = arith.constant 1.000000e+00 : f32
    %85 = vector.broadcast %cst_19 : f32 to vector<8x32xf32>
    %86 = arith.addf %85, %84 : vector<8x32xf32>
    %87 = arith.divf %85, %86 : vector<8x32xf32>
    %88 = arith.mulf %79, %60 : vector<8x32xf32>
    %89 = arith.mulf %73, %81 : vector<8x32xf32>
    %90 = arith.addf %88, %89 : vector<8x32xf32>
    %91 = math.tanh %90 : vector<8x32xf32>
    %92 = arith.mulf %87, %91 : vector<8x32xf32>
    %c3_i32 = arith.constant 3 : i32
    %93 = arith.index_cast %c3_i32 : i32 to index
    %c0_20 = arith.constant 0 : index
    %c0_21 = arith.constant 0 : index
    %94 = vector.load %arg0[%93, %c0_20, %c0_21] : memref<8x8x128xf32, #tpu.memory_space<vmem>>, vector<1x8x128xf32>
    %95 = vector.shape_cast %94 : vector<1x8x128xf32> to vector<8x128xf32>
    %cst_22 = arith.constant dense<0.000000e+00> : vector<8x128xf32>
    %96 = tpu.matmul %92, %0, %cst_22 {dimension_numbers = #tpu.dot_dimension_numbers<[1], [0], [0], [1], [0, 0, 1, 1], [], []>} : vector<8x32xf32>, vector<32x128xf32>, vector<8x128xf32> -> vector<8x128xf32>
    %97 = arith.addf %95, %96 : vector<8x128xf32>
    %98 = vector.extract_strided_slice %97 {offsets = [0, 0], sizes = [8, 32], strides = [1, 1]} : vector<8x128xf32> to vector<8x32xf32>
    %99 = arith.negf %98 : vector<8x32xf32>
    %100 = math.exp %99 : vector<8x32xf32>
    %cst_23 = arith.constant 1.000000e+00 : f32
    %101 = vector.broadcast %cst_23 : f32 to vector<8x32xf32>
    %102 = arith.addf %101, %100 : vector<8x32xf32>
    %103 = arith.divf %101, %102 : vector<8x32xf32>
    %104 = vector.extract_strided_slice %97 {offsets = [0, 32], sizes = [8, 32], strides = [1, 1]} : vector<8x128xf32> to vector<8x32xf32>
    %105 = arith.negf %104 : vector<8x32xf32>
    %106 = math.exp %105 : vector<8x32xf32>
    %cst_24 = arith.constant 1.000000e+00 : f32
    %107 = vector.broadcast %cst_24 : f32 to vector<8x32xf32>
    %108 = arith.addf %107, %106 : vector<8x32xf32>
    %109 = arith.divf %107, %108 : vector<8x32xf32>
    %110 = vector.extract_strided_slice %97 {offsets = [0, 64], sizes = [8, 32], strides = [1, 1]} : vector<8x128xf32> to vector<8x32xf32>
    %111 = math.tanh %110 : vector<8x32xf32>
    %112 = vector.extract_strided_slice %97 {offsets = [0, 96], sizes = [8, 32], strides = [1, 1]} : vector<8x128xf32> to vector<8x32xf32>
    %113 = arith.negf %112 : vector<8x32xf32>
    %114 = math.exp %113 : vector<8x32xf32>
    %cst_25 = arith.constant 1.000000e+00 : f32
    %115 = vector.broadcast %cst_25 : f32 to vector<8x32xf32>
    %116 = arith.addf %115, %114 : vector<8x32xf32>
    %117 = arith.divf %115, %116 : vector<8x32xf32>
    %118 = arith.mulf %109, %90 : vector<8x32xf32>
    %119 = arith.mulf %103, %111 : vector<8x32xf32>
    %120 = arith.addf %118, %119 : vector<8x32xf32>
    %121 = math.tanh %120 : vector<8x32xf32>
    %122 = arith.mulf %117, %121 : vector<8x32xf32>
    %c4_i32 = arith.constant 4 : i32
    %123 = arith.index_cast %c4_i32 : i32 to index
    %c0_26 = arith.constant 0 : index
    %c0_27 = arith.constant 0 : index
    %124 = vector.load %arg0[%123, %c0_26, %c0_27] : memref<8x8x128xf32, #tpu.memory_space<vmem>>, vector<1x8x128xf32>
    %125 = vector.shape_cast %124 : vector<1x8x128xf32> to vector<8x128xf32>
    %cst_28 = arith.constant dense<0.000000e+00> : vector<8x128xf32>
    %126 = tpu.matmul %122, %0, %cst_28 {dimension_numbers = #tpu.dot_dimension_numbers<[1], [0], [0], [1], [0, 0, 1, 1], [], []>} : vector<8x32xf32>, vector<32x128xf32>, vector<8x128xf32> -> vector<8x128xf32>
    %127 = arith.addf %125, %126 : vector<8x128xf32>
    %128 = vector.extract_strided_slice %127 {offsets = [0, 0], sizes = [8, 32], strides = [1, 1]} : vector<8x128xf32> to vector<8x32xf32>
    %129 = arith.negf %128 : vector<8x32xf32>
    %130 = math.exp %129 : vector<8x32xf32>
    %cst_29 = arith.constant 1.000000e+00 : f32
    %131 = vector.broadcast %cst_29 : f32 to vector<8x32xf32>
    %132 = arith.addf %131, %130 : vector<8x32xf32>
    %133 = arith.divf %131, %132 : vector<8x32xf32>
    %134 = vector.extract_strided_slice %127 {offsets = [0, 32], sizes = [8, 32], strides = [1, 1]} : vector<8x128xf32> to vector<8x32xf32>
    %135 = arith.negf %134 : vector<8x32xf32>
    %136 = math.exp %135 : vector<8x32xf32>
    %cst_30 = arith.constant 1.000000e+00 : f32
    %137 = vector.broadcast %cst_30 : f32 to vector<8x32xf32>
    %138 = arith.addf %137, %136 : vector<8x32xf32>
    %139 = arith.divf %137, %138 : vector<8x32xf32>
    %140 = vector.extract_strided_slice %127 {offsets = [0, 64], sizes = [8, 32], strides = [1, 1]} : vector<8x128xf32> to vector<8x32xf32>
    %141 = math.tanh %140 : vector<8x32xf32>
    %142 = vector.extract_strided_slice %127 {offsets = [0, 96], sizes = [8, 32], strides = [1, 1]} : vector<8x128xf32> to vector<8x32xf32>
    %143 = arith.negf %142 : vector<8x32xf32>
    %144 = math.exp %143 : vector<8x32xf32>
    %cst_31 = arith.constant 1.000000e+00 : f32
    %145 = vector.broadcast %cst_31 : f32 to vector<8x32xf32>
    %146 = arith.addf %145, %144 : vector<8x32xf32>
    %147 = arith.divf %145, %146 : vector<8x32xf32>
    %148 = arith.mulf %139, %120 : vector<8x32xf32>
    %149 = arith.mulf %133, %141 : vector<8x32xf32>
    %150 = arith.addf %148, %149 : vector<8x32xf32>
    %151 = math.tanh %150 : vector<8x32xf32>
    %152 = arith.mulf %147, %151 : vector<8x32xf32>
    %c5_i32 = arith.constant 5 : i32
    %153 = arith.index_cast %c5_i32 : i32 to index
    %c0_32 = arith.constant 0 : index
    %c0_33 = arith.constant 0 : index
    %154 = vector.load %arg0[%153, %c0_32, %c0_33] : memref<8x8x128xf32, #tpu.memory_space<vmem>>, vector<1x8x128xf32>
    %155 = vector.shape_cast %154 : vector<1x8x128xf32> to vector<8x128xf32>
    %cst_34 = arith.constant dense<0.000000e+00> : vector<8x128xf32>
    %156 = tpu.matmul %152, %0, %cst_34 {dimension_numbers = #tpu.dot_dimension_numbers<[1], [0], [0], [1], [0, 0, 1, 1], [], []>} : vector<8x32xf32>, vector<32x128xf32>, vector<8x128xf32> -> vector<8x128xf32>
    %157 = arith.addf %155, %156 : vector<8x128xf32>
    %158 = vector.extract_strided_slice %157 {offsets = [0, 0], sizes = [8, 32], strides = [1, 1]} : vector<8x128xf32> to vector<8x32xf32>
    %159 = arith.negf %158 : vector<8x32xf32>
    %160 = math.exp %159 : vector<8x32xf32>
    %cst_35 = arith.constant 1.000000e+00 : f32
    %161 = vector.broadcast %cst_35 : f32 to vector<8x32xf32>
    %162 = arith.addf %161, %160 : vector<8x32xf32>
    %163 = arith.divf %161, %162 : vector<8x32xf32>
    %164 = vector.extract_strided_slice %157 {offsets = [0, 32], sizes = [8, 32], strides = [1, 1]} : vector<8x128xf32> to vector<8x32xf32>
    %165 = arith.negf %164 : vector<8x32xf32>
    %166 = math.exp %165 : vector<8x32xf32>
    %cst_36 = arith.constant 1.000000e+00 : f32
    %167 = vector.broadcast %cst_36 : f32 to vector<8x32xf32>
    %168 = arith.addf %167, %166 : vector<8x32xf32>
    %169 = arith.divf %167, %168 : vector<8x32xf32>
    %170 = vector.extract_strided_slice %157 {offsets = [0, 64], sizes = [8, 32], strides = [1, 1]} : vector<8x128xf32> to vector<8x32xf32>
    %171 = math.tanh %170 : vector<8x32xf32>
    %172 = vector.extract_strided_slice %157 {offsets = [0, 96], sizes = [8, 32], strides = [1, 1]} : vector<8x128xf32> to vector<8x32xf32>
    %173 = arith.negf %172 : vector<8x32xf32>
    %174 = math.exp %173 : vector<8x32xf32>
    %cst_37 = arith.constant 1.000000e+00 : f32
    %175 = vector.broadcast %cst_37 : f32 to vector<8x32xf32>
    %176 = arith.addf %175, %174 : vector<8x32xf32>
    %177 = arith.divf %175, %176 : vector<8x32xf32>
    %178 = arith.mulf %169, %150 : vector<8x32xf32>
    %179 = arith.mulf %163, %171 : vector<8x32xf32>
    %180 = arith.addf %178, %179 : vector<8x32xf32>
    %181 = math.tanh %180 : vector<8x32xf32>
    %182 = arith.mulf %177, %181 : vector<8x32xf32>
    %c6_i32 = arith.constant 6 : i32
    %183 = arith.index_cast %c6_i32 : i32 to index
    %c0_38 = arith.constant 0 : index
    %c0_39 = arith.constant 0 : index
    %184 = vector.load %arg0[%183, %c0_38, %c0_39] : memref<8x8x128xf32, #tpu.memory_space<vmem>>, vector<1x8x128xf32>
    %185 = vector.shape_cast %184 : vector<1x8x128xf32> to vector<8x128xf32>
    %cst_40 = arith.constant dense<0.000000e+00> : vector<8x128xf32>
    %186 = tpu.matmul %182, %0, %cst_40 {dimension_numbers = #tpu.dot_dimension_numbers<[1], [0], [0], [1], [0, 0, 1, 1], [], []>} : vector<8x32xf32>, vector<32x128xf32>, vector<8x128xf32> -> vector<8x128xf32>
    %187 = arith.addf %185, %186 : vector<8x128xf32>
    %188 = vector.extract_strided_slice %187 {offsets = [0, 0], sizes = [8, 32], strides = [1, 1]} : vector<8x128xf32> to vector<8x32xf32>
    %189 = arith.negf %188 : vector<8x32xf32>
    %190 = math.exp %189 : vector<8x32xf32>
    %cst_41 = arith.constant 1.000000e+00 : f32
    %191 = vector.broadcast %cst_41 : f32 to vector<8x32xf32>
    %192 = arith.addf %191, %190 : vector<8x32xf32>
    %193 = arith.divf %191, %192 : vector<8x32xf32>
    %194 = vector.extract_strided_slice %187 {offsets = [0, 32], sizes = [8, 32], strides = [1, 1]} : vector<8x128xf32> to vector<8x32xf32>
    %195 = arith.negf %194 : vector<8x32xf32>
    %196 = math.exp %195 : vector<8x32xf32>
    %cst_42 = arith.constant 1.000000e+00 : f32
    %197 = vector.broadcast %cst_42 : f32 to vector<8x32xf32>
    %198 = arith.addf %197, %196 : vector<8x32xf32>
    %199 = arith.divf %197, %198 : vector<8x32xf32>
    %200 = vector.extract_strided_slice %187 {offsets = [0, 64], sizes = [8, 32], strides = [1, 1]} : vector<8x128xf32> to vector<8x32xf32>
    %201 = math.tanh %200 : vector<8x32xf32>
    %202 = vector.extract_strided_slice %187 {offsets = [0, 96], sizes = [8, 32], strides = [1, 1]} : vector<8x128xf32> to vector<8x32xf32>
    %203 = arith.negf %202 : vector<8x32xf32>
    %204 = math.exp %203 : vector<8x32xf32>
    %cst_43 = arith.constant 1.000000e+00 : f32
    %205 = vector.broadcast %cst_43 : f32 to vector<8x32xf32>
    %206 = arith.addf %205, %204 : vector<8x32xf32>
    %207 = arith.divf %205, %206 : vector<8x32xf32>
    %208 = arith.mulf %199, %180 : vector<8x32xf32>
    %209 = arith.mulf %193, %201 : vector<8x32xf32>
    %210 = arith.addf %208, %209 : vector<8x32xf32>
    %211 = math.tanh %210 : vector<8x32xf32>
    %212 = arith.mulf %207, %211 : vector<8x32xf32>
    %c7_i32 = arith.constant 7 : i32
    %213 = arith.index_cast %c7_i32 : i32 to index
    %c0_44 = arith.constant 0 : index
    %c0_45 = arith.constant 0 : index
    %214 = vector.load %arg0[%213, %c0_44, %c0_45] : memref<8x8x128xf32, #tpu.memory_space<vmem>>, vector<1x8x128xf32>
    %215 = vector.shape_cast %214 : vector<1x8x128xf32> to vector<8x128xf32>
    %cst_46 = arith.constant dense<0.000000e+00> : vector<8x128xf32>
    %216 = tpu.matmul %212, %0, %cst_46 {dimension_numbers = #tpu.dot_dimension_numbers<[1], [0], [0], [1], [0, 0, 1, 1], [], []>} : vector<8x32xf32>, vector<32x128xf32>, vector<8x128xf32> -> vector<8x128xf32>
    %217 = arith.addf %215, %216 : vector<8x128xf32>
    %218 = vector.extract_strided_slice %217 {offsets = [0, 0], sizes = [8, 32], strides = [1, 1]} : vector<8x128xf32> to vector<8x32xf32>
    %219 = arith.negf %218 : vector<8x32xf32>
    %220 = math.exp %219 : vector<8x32xf32>
    %cst_47 = arith.constant 1.000000e+00 : f32
    %221 = vector.broadcast %cst_47 : f32 to vector<8x32xf32>
    %222 = arith.addf %221, %220 : vector<8x32xf32>
    %223 = arith.divf %221, %222 : vector<8x32xf32>
    %224 = vector.extract_strided_slice %217 {offsets = [0, 32], sizes = [8, 32], strides = [1, 1]} : vector<8x128xf32> to vector<8x32xf32>
    %225 = arith.negf %224 : vector<8x32xf32>
    %226 = math.exp %225 : vector<8x32xf32>
    %cst_48 = arith.constant 1.000000e+00 : f32
    %227 = vector.broadcast %cst_48 : f32 to vector<8x32xf32>
    %228 = arith.addf %227, %226 : vector<8x32xf32>
    %229 = arith.divf %227, %228 : vector<8x32xf32>
    %230 = vector.extract_strided_slice %217 {offsets = [0, 64], sizes = [8, 32], strides = [1, 1]} : vector<8x128xf32> to vector<8x32xf32>
    %231 = math.tanh %230 : vector<8x32xf32>
    %232 = vector.extract_strided_slice %217 {offsets = [0, 96], sizes = [8, 32], strides = [1, 1]} : vector<8x128xf32> to vector<8x32xf32>
    %233 = arith.negf %232 : vector<8x32xf32>
    %234 = math.exp %233 : vector<8x32xf32>
    %cst_49 = arith.constant 1.000000e+00 : f32
    %235 = vector.broadcast %cst_49 : f32 to vector<8x32xf32>
    %236 = arith.addf %235, %234 : vector<8x32xf32>
    %237 = arith.divf %235, %236 : vector<8x32xf32>
    %238 = arith.mulf %229, %210 : vector<8x32xf32>
    %239 = arith.mulf %223, %231 : vector<8x32xf32>
    %240 = arith.addf %238, %239 : vector<8x32xf32>
    %241 = math.tanh %240 : vector<8x32xf32>
    %242 = arith.mulf %237, %241 : vector<8x32xf32>
    %c8_i32 = arith.constant 8 : i32
    %c0_50 = arith.constant 0 : index
    %c0_51 = arith.constant 0 : index
    %243 = vector.load %arg2[%c0_50, %c0_51] : memref<8x32xf32, #tpu.memory_space<vmem>>, vector<8x32xf32>
    tpu.vector_store %arg2[%c0_50, %c0_51], %242 {strides = array<i32>} : memref<8x32xf32, #tpu.memory_space<vmem>>, vector<8x32xf32>,
    return
  }
}

</mosaic_0001>

<llo_original>
// kernel: lstm_model_forward.1
$region0: #{lstm_model_forward.1}
  #allocation0 [shape = 'u32[]', space=smem, size = 0x4, offset = 0x4, fixed_abs, tag = 'smem constant byte address 0x4 - core index']
  #allocation1 [shape = 'u32[72,128]{1,0:T(1,128)}', space=vmem, size = 0x9000, scoped, tag = 'internal scratch']
  %s0 = inlined_call_operand.vmem [shape: f32[8,8,128], index: 0, kind: input, shape index: {}]
  %s1 = inlined_call_operand.vmem [shape: f32[32,128], index: 1, kind: input, shape index: {}]
  %s2 = inlined_call_operand.vmem [shape: f32[8,32], index: 2, kind: output, shape index: {}]
  %s3 = sld [smem:[#allocation0]]
  $region18: #{lstm_model_forward.1} parent=0
    _
  %s5 = ssub.s32 1, %s3
  %s6 = scalar_select 0, %s5, %s3
  // Predicated region
  $region2: #{lstm_model_forward.1} parent=0 // pred_check
    _
  $region3: #{lstm_model_forward.1} parent=0 // pred_check_branch
    %8 = sbr.rel (0) target = $region5
  $region4: #{lstm_model_forward.1} parent=0 // pred_region
    _
  $region5: #{lstm_model_forward.1} parent=0 // pred_fallthru
    _
  // Predicated region
  $region6: #{lstm_model_forward.1} parent=0 // pred_check
    _
  $region7: #{lstm_model_forward.1} parent=0 // pred_check_branch
    %10 = sbr.rel (0) target = $region9
  $region8: #{lstm_model_forward.1} parent=0 // pred_region
    _
  $region9: #{lstm_model_forward.1} parent=0 // pred_fallthru
    _
  %v11 = vld [vmem:[%s1] sm:$0xff]
  %v12 = vld [vmem:[%s1 + $0x8] sm:$0xff]
  %v13 = vld [vmem:[%s1 + $0x10] sm:$0xff]
  %v14 = vld [vmem:[%s1 + $0x18] sm:$0xff]
  %v15 = vld [vmem:[%s0] sm:$0xff]
  %vm16 = vcmask 261120
  %v18 = vsel %vm16, 0.0, 0
  %20 = vmatpush.msra.mxu0 0.0
  %21 = vmatpush.msra.mxu0 0.0
  %22 = vmatpush.msra.mxu0 0.0
  %23 = vmatpush.msra.mxu0 0.0
  %24 = vmatpush.msra.mxu0 0.0
  %25 = vmatpush.msra.mxu0 0.0
  %26 = vmatpush.msra.mxu0 0.0
  %27 = vmatpush.msra.mxu0 0.0
  %28 = vmatpush.msra.mxu0 0.0
  %29 = vmatpush.msra.mxu0 0.0
  %30 = vmatpush.msra.mxu0 0.0
  %31 = vmatpush.msra.mxu0 0.0
  %32 = vmatpush.msra.mxu0 %v14
  %33 = vmatpush.msra.mxu0 %v13
  %34 = vmatpush.msra.mxu0 %v12
  %35 = vmatpush.msra.mxu0 %v11
  %36 = vmatmul.f32.gmra.mxu0 %v18
  %v37 = vpop.f32.mrf.mxu0
  %v38 = vadd.f32 0.0, %v37
  %39 = vdwg.mxu0
  %v40 = vadd.f32 %v15, %v38
  %v41 = vxor.u32 %v40, 2147483648
  %v42 = vmul.f32 %v41, 1.442695
  %v43 = vpow.pop %v42
  %v44 = vadd.f32 %v43, 1.0
  %v45 = vrcp.pop %v44
  %v46 = vmul.f32 %v44, %v45
  %v47 = vsub.f32 1.0, %v46
  %v48 = vmul.f32 %v45, %v47
  %v49 = vadd.f32 %v45, %v48
  %vm50 = vweird.f32 %v44
  %vm51 = vweird.f32 %v45
  %vm52 = vmor %vm50, %vm51
  %v53 = vsel %vm52, %v45, %v49
  %v54 = vand.u32 2147483647, %v44
  %vm55 = vcmp.eq.f32.partialorder %v54, 8.507059e+37
  %v56 = vand.u32 %v44, 2147483648
  %v57 = vor.u32 1.1754944e-38, %v56
  %v58 = vsel %vm55, %v57, %v53
  %v59 = vmul.f32 1.0, %v58
  %v60 = vtanh.pop %v40
  %v61 = vmul.f32 %v59, 0.0
  %63 = vrot.lane.b32.xlu0 %v60, 64
  %v64 = vpop.permute.xlu0 %63
  %v66 = vmul.f32 %v59, %v64
  %68 = vrot.lane.b32.xlu0 %v66, 32
  %v69 = vpop.permute.xlu0 %68
  %v71 = vadd.f32 %v61, %v69
  %v72 = vtanh.pop %v71
  %74 = vrot.lane.b32.xlu0 %v72, 64
  %v75 = vpop.permute.xlu0 %74
  %v77 = vmul.f32 %v59, %v75
  %s78 = scalar_lea.vmem %s0, 8
  %v79 = vld [vmem:[%s78] sm:$0xff]
  %81 = vrot.lane.b32.xlu0 %v77, 32
  %v82 = vpop.permute.xlu0 %81
  %v83 = vsel %vm16, %v82, 0
  %85 = vmatpush.msra.mxu0 0.0
  %86 = vmatpush.msra.mxu0 0.0
  %87 = vmatpush.msra.mxu0 0.0
  %88 = vmatpush.msra.mxu0 0.0
  %89 = vmatpush.msra.mxu0 0.0
  %90 = vmatpush.msra.mxu0 0.0
  %91 = vmatpush.msra.mxu0 0.0
  %92 = vmatpush.msra.mxu0 0.0
  %93 = vmatpush.msra.mxu0 0.0
  %94 = vmatpush.msra.mxu0 0.0
  %95 = vmatpush.msra.mxu0 0.0
  %96 = vmatpush.msra.mxu0 0.0
  %97 = vmatpush.msra.mxu0 %v14
  %98 = vmatpush.msra.mxu0 %v13
  %99 = vmatpush.msra.mxu0 %v12
  %100 = vmatpush.msra.mxu0 %v11
  %101 = vmatmul.f32.gmra.mxu0 %v83
  %v102 = vpop.f32.mrf.mxu0
  %v103 = vadd.f32 0.0, %v102
  %104 = vdwg.mxu0
  %v105 = vadd.f32 %v79, %v103
  %v106 = vxor.u32 %v105, 2147483648
  %v107 = vmul.f32 %v106, 1.442695
  %v108 = vpow.pop %v107
  %v109 = vadd.f32 %v108, 1.0
  %v110 = vrcp.pop %v109
  %v111 = vmul.f32 %v109, %v110
  %v112 = vsub.f32 1.0, %v111
  %v113 = vmul.f32 %v110, %v112
  %v114 = vadd.f32 %v110, %v113
  %vm115 = vweird.f32 %v109
  %vm116 = vweird.f32 %v110
  %vm117 = vmor %vm115, %vm116
  %v118 = vsel %vm117, %v110, %v114
  %v119 = vand.u32 2147483647, %v109
  %vm120 = vcmp.eq.f32.partialorder %v119, 8.507059e+37
  %v121 = vand.u32 %v109, 2147483648
  %v122 = vor.u32 1.1754944e-38, %v121
  %v123 = vsel %vm120, %v122, %v118
  %v124 = vmul.f32 1.0, %v123
  %v125 = vtanh.pop %v105
  %v126 = vmul.f32 %v124, %v71
  %128 = vrot.lane.b32.xlu0 %v125, 64
  %v129 = vpop.permute.xlu0 %128
  %v131 = vmul.f32 %v124, %v129
  %133 = vrot.lane.b32.xlu0 %v131, 32
  %v134 = vpop.permute.xlu0 %133
  %v136 = vadd.f32 %v126, %v134
  %v137 = vtanh.pop %v136
  %139 = vrot.lane.b32.xlu0 %v137, 64
  %v140 = vpop.permute.xlu0 %139
  %v142 = vmul.f32 %v124, %v140
  %s143 = scalar_lea.vmem %s0, 16
  %v144 = vld [vmem:[%s143] sm:$0xff]
  %146 = vrot.lane.b32.xlu0 %v142, 32
  %v147 = vpop.permute.xlu0 %146
  %v148 = vsel %vm16, %v147, 0
  %150 = vmatpush.msra.mxu0 0.0
  %151 = vmatpush.msra.mxu0 0.0
  %152 = vmatpush.msra.mxu0 0.0
  %153 = vmatpush.msra.mxu0 0.0
  %154 = vmatpush.msra.mxu0 0.0
  %155 = vmatpush.msra.mxu0 0.0
  %156 = vmatpush.msra.mxu0 0.0
  %157 = vmatpush.msra.mxu0 0.0
  %158 = vmatpush.msra.mxu0 0.0
  %159 = vmatpush.msra.mxu0 0.0
  %160 = vmatpush.msra.mxu0 0.0
  %161 = vmatpush.msra.mxu0 0.0
  %162 = vmatpush.msra.mxu0 %v14
  %163 = vmatpush.msra.mxu0 %v13
  %164 = vmatpush.msra.mxu0 %v12
  %165 = vmatpush.msra.mxu0 %v11
  %166 = vmatmul.f32.gmra.mxu0 %v148
  %v167 = vpop.f32.mrf.mxu0
  %v168 = vadd.f32 0.0, %v167
  %169 = vdwg.mxu0
  %v170 = vadd.f32 %v144, %v168
  %v171 = vxor.u32 %v170, 2147483648
  %v172 = vmul.f32 %v171, 1.442695
  %v173 = vpow.pop %v172
  %v174 = vadd.f32 %v173, 1.0
  %v175 = vrcp.pop %v174
  %v176 = vmul.f32 %v174, %v175
  %v177 = vsub.f32 1.0, %v176
  %v178 = vmul.f32 %v175, %v177
  %v179 = vadd.f32 %v175, %v178
  %vm180 = vweird.f32 %v174
  %vm181 = vweird.f32 %v175
  %vm182 = vmor %vm180, %vm181
  %v183 = vsel %vm182, %v175, %v179
  %v184 = vand.u32 2147483647, %v174
  %vm185 = vcmp.eq.f32.partialorder %v184, 8.507059e+37
  %v186 = vand.u32 %v174, 2147483648
  %v187 = vor.u32 1.1754944e-38, %v186
  %v188 = vsel %vm185, %v187, %v183
  %v189 = vmul.f32 1.0, %v188
  %v190 = vtanh.pop %v170
  %v191 = vmul.f32 %v189, %v136
  %193 = vrot.lane.b32.xlu0 %v190, 64
  %v194 = vpop.permute.xlu0 %193
  %v196 = vmul.f32 %v189, %v194
  %198 = vrot.lane.b32.xlu0 %v196, 32
  %v199 = vpop.permute.xlu0 %198
  %v201 = vadd.f32 %v191, %v199
  %v202 = vtanh.pop %v201
  %204 = vrot.lane.b32.xlu0 %v202, 64
  %v205 = vpop.permute.xlu0 %204
  %v207 = vmul.f32 %v189, %v205
  %s208 = scalar_lea.vmem %s0, 24
  %v209 = vld [vmem:[%s208] sm:$0xff]
  %211 = vrot.lane.b32.xlu0 %v207, 32
  %v212 = vpop.permute.xlu0 %211
  %v213 = vsel %vm16, %v212, 0
  %215 = vmatpush.msra.mxu0 0.0
  %216 = vmatpush.msra.mxu0 0.0
  %217 = vmatpush.msra.mxu0 0.0
  %218 = vmatpush.msra.mxu0 0.0
  %219 = vmatpush.msra.mxu0 0.0
  %220 = vmatpush.msra.mxu0 0.0
  %221 = vmatpush.msra.mxu0 0.0
  %222 = vmatpush.msra.mxu0 0.0
  %223 = vmatpush.msra.mxu0 0.0
  %224 = vmatpush.msra.mxu0 0.0
  %225 = vmatpush.msra.mxu0 0.0
  %226 = vmatpush.msra.mxu0 0.0
  %227 = vmatpush.msra.mxu0 %v14
  %228 = vmatpush.msra.mxu0 %v13
  %229 = vmatpush.msra.mxu0 %v12
  %230 = vmatpush.msra.mxu0 %v11
  %231 = vmatmul.f32.gmra.mxu0 %v213
  %v232 = vpop.f32.mrf.mxu0
  %v233 = vadd.f32 0.0, %v232
  %234 = vdwg.mxu0
  %v235 = vadd.f32 %v209, %v233
  %v236 = vxor.u32 %v235, 2147483648
  %v237 = vmul.f32 %v236, 1.442695
  %v238 = vpow.pop %v237
  %v239 = vadd.f32 %v238, 1.0
  %v240 = vrcp.pop %v239
  %v241 = vmul.f32 %v239, %v240
  %v242 = vsub.f32 1.0, %v241
  %v243 = vmul.f32 %v240, %v242
  %v244 = vadd.f32 %v240, %v243
  %vm245 = vweird.f32 %v239
  %vm246 = vweird.f32 %v240
  %vm247 = vmor %vm245, %vm246
  %v248 = vsel %vm247, %v240, %v244
  %v249 = vand.u32 2147483647, %v239
  %vm250 = vcmp.eq.f32.partialorder %v249, 8.507059e+37
  %v251 = vand.u32 %v239, 2147483648
  %v252 = vor.u32 1.1754944e-38, %v251
  %v253 = vsel %vm250, %v252, %v248
  %v254 = vmul.f32 1.0, %v253
  %v255 = vtanh.pop %v235
  %v256 = vmul.f32 %v254, %v201
  %258 = vrot.lane.b32.xlu0 %v255, 64
  %v259 = vpop.permute.xlu0 %258
  %v261 = vmul.f32 %v254, %v259
  %263 = vrot.lane.b32.xlu0 %v261, 32
  %v264 = vpop.permute.xlu0 %263
  %v266 = vadd.f32 %v256, %v264
  %v267 = vtanh.pop %v266
  %269 = vrot.lane.b32.xlu0 %v267, 64
  %v270 = vpop.permute.xlu0 %269
  %v272 = vmul.f32 %v254, %v270
  %s273 = scalar_lea.vmem %s0, 32
  %v274 = vld [vmem:[%s273] sm:$0xff]
  %276 = vrot.lane.b32.xlu0 %v272, 32
  %v277 = vpop.permute.xlu0 %276
  %v278 = vsel %vm16, %v277, 0
  %280 = vmatpush.msra.mxu0 0.0
  %281 = vmatpush.msra.mxu0 0.0
  %282 = vmatpush.msra.mxu0 0.0
  %283 = vmatpush.msra.mxu0 0.0
  %284 = vmatpush.msra.mxu0 0.0
  %285 = vmatpush.msra.mxu0 0.0
  %286 = vmatpush.msra.mxu0 0.0
  %287 = vmatpush.msra.mxu0 0.0
  %288 = vmatpush.msra.mxu0 0.0
  %289 = vmatpush.msra.mxu0 0.0
  %290 = vmatpush.msra.mxu0 0.0
  %291 = vmatpush.msra.mxu0 0.0
  %292 = vmatpush.msra.mxu0 %v14
  %293 = vmatpush.msra.mxu0 %v13
  %294 = vmatpush.msra.mxu0 %v12
  %295 = vmatpush.msra.mxu0 %v11
  %296 = vmatmul.f32.gmra.mxu0 %v278
  %v297 = vpop.f32.mrf.mxu0
  %v298 = vadd.f32 0.0, %v297
  %299 = vdwg.mxu0
  %v300 = vadd.f32 %v274, %v298
  %v301 = vxor.u32 %v300, 2147483648
  %v302 = vmul.f32 %v301, 1.442695
  %v303 = vpow.pop %v302
  %v304 = vadd.f32 %v303, 1.0
  %v305 = vrcp.pop %v304
  %v306 = vmul.f32 %v304, %v305
  %v307 = vsub.f32 1.0, %v306
  %v308 = vmul.f32 %v305, %v307
  %v309 = vadd.f32 %v305, %v308
  %vm310 = vweird.f32 %v304
  %vm311 = vweird.f32 %v305
  %vm312 = vmor %vm310, %vm311
  %v313 = vsel %vm312, %v305, %v309
  %v314 = vand.u32 2147483647, %v304
  %vm315 = vcmp.eq.f32.partialorder %v314, 8.507059e+37
  %v316 = vand.u32 %v304, 2147483648
  %v317 = vor.u32 1.1754944e-38, %v316
  %v318 = vsel %vm315, %v317, %v313
  %v319 = vmul.f32 1.0, %v318
  %v320 = vtanh.pop %v300
  %v321 = vmul.f32 %v319, %v266
  %323 = vrot.lane.b32.xlu0 %v320, 64
  %v324 = vpop.permute.xlu0 %323
  %v326 = vmul.f32 %v319, %v324
  %328 = vrot.lane.b32.xlu0 %v326, 32
  %v329 = vpop.permute.xlu0 %328
  %v331 = vadd.f32 %v321, %v329
  %v332 = vtanh.pop %v331
  %334 = vrot.lane.b32.xlu0 %v332, 64
  %v335 = vpop.permute.xlu0 %334
  %v337 = vmul.f32 %v319, %v335
  %s338 = scalar_lea.vmem %s0, 40
  %v339 = vld [vmem:[%s338] sm:$0xff]
  %341 = vrot.lane.b32.xlu0 %v337, 32
  %v342 = vpop.permute.xlu0 %341
  %v343 = vsel %vm16, %v342, 0
  %345 = vmatpush.msra.mxu0 0.0
  %346 = vmatpush.msra.mxu0 0.0
  %347 = vmatpush.msra.mxu0 0.0
  %348 = vmatpush.msra.mxu0 0.0
  %349 = vmatpush.msra.mxu0 0.0
  %350 = vmatpush.msra.mxu0 0.0
  %351 = vmatpush.msra.mxu0 0.0
  %352 = vmatpush.msra.mxu0 0.0
  %353 = vmatpush.msra.mxu0 0.0
  %354 = vmatpush.msra.mxu0 0.0
  %355 = vmatpush.msra.mxu0 0.0
  %356 = vmatpush.msra.mxu0 0.0
  %357 = vmatpush.msra.mxu0 %v14
  %358 = vmatpush.msra.mxu0 %v13
  %359 = vmatpush.msra.mxu0 %v12
  %360 = vmatpush.msra.mxu0 %v11
  %361 = vmatmul.f32.gmra.mxu0 %v343
  %v362 = vpop.f32.mrf.mxu0
  %v363 = vadd.f32 0.0, %v362
  %364 = vdwg.mxu0
  %v365 = vadd.f32 %v339, %v363
  %v366 = vxor.u32 %v365, 2147483648
  %v367 = vmul.f32 %v366, 1.442695
  %v368 = vpow.pop %v367
  %v369 = vadd.f32 %v368, 1.0
  %v370 = vrcp.pop %v369
  %v371 = vmul.f32 %v369, %v370
  %v372 = vsub.f32 1.0, %v371
  %v373 = vmul.f32 %v370, %v372
  %v374 = vadd.f32 %v370, %v373
  %vm375 = vweird.f32 %v369
  %vm376 = vweird.f32 %v370
  %vm377 = vmor %vm375, %vm376
  %v378 = vsel %vm377, %v370, %v374
  %v379 = vand.u32 2147483647, %v369
  %vm380 = vcmp.eq.f32.partialorder %v379, 8.507059e+37
  %v381 = vand.u32 %v369, 2147483648
  %v382 = vor.u32 1.1754944e-38, %v381
  %v383 = vsel %vm380, %v382, %v378
  %v384 = vmul.f32 1.0, %v383
  %v385 = vtanh.pop %v365
  %v386 = vmul.f32 %v384, %v331
  %388 = vrot.lane.b32.xlu0 %v385, 64
  %v389 = vpop.permute.xlu0 %388
  %v391 = vmul.f32 %v384, %v389
  %393 = vrot.lane.b32.xlu0 %v391, 32
  %v394 = vpop.permute.xlu0 %393
  %v396 = vadd.f32 %v386, %v394
  %v397 = vtanh.pop %v396
  %399 = vrot.lane.b32.xlu0 %v397, 64
  %v400 = vpop.permute.xlu0 %399
  %v402 = vmul.f32 %v384, %v400
  %s403 = scalar_lea.vmem %s0, 48
  %v404 = vld [vmem:[%s403] sm:$0xff]
  %406 = vrot.lane.b32.xlu0 %v402, 32
  %v407 = vpop.permute.xlu0 %406
  %v408 = vsel %vm16, %v407, 0
  %410 = vmatpush.msra.mxu0 0.0
  %411 = vmatpush.msra.mxu0 0.0
  %412 = vmatpush.msra.mxu0 0.0
  %413 = vmatpush.msra.mxu0 0.0
  %414 = vmatpush.msra.mxu0 0.0
  %415 = vmatpush.msra.mxu0 0.0
  %416 = vmatpush.msra.mxu0 0.0
  %417 = vmatpush.msra.mxu0 0.0
  %418 = vmatpush.msra.mxu0 0.0
  %419 = vmatpush.msra.mxu0 0.0
  %420 = vmatpush.msra.mxu0 0.0
  %421 = vmatpush.msra.mxu0 0.0
  %422 = vmatpush.msra.mxu0 %v14
  %423 = vmatpush.msra.mxu0 %v13
  %424 = vmatpush.msra.mxu0 %v12
  %425 = vmatpush.msra.mxu0 %v11
  %426 = vmatmul.f32.gmra.mxu0 %v408
  %v427 = vpop.f32.mrf.mxu0
  %v428 = vadd.f32 0.0, %v427
  %429 = vdwg.mxu0
  %v430 = vadd.f32 %v404, %v428
  %v431 = vxor.u32 %v430, 2147483648
  %v432 = vmul.f32 %v431, 1.442695
  %v433 = vpow.pop %v432
  %v434 = vadd.f32 %v433, 1.0
  %v435 = vrcp.pop %v434
  %v436 = vmul.f32 %v434, %v435
  %v437 = vsub.f32 1.0, %v436
  %v438 = vmul.f32 %v435, %v437
  %v439 = vadd.f32 %v435, %v438
  %vm440 = vweird.f32 %v434
  %vm441 = vweird.f32 %v435
  %vm442 = vmor %vm440, %vm441
  %v443 = vsel %vm442, %v435, %v439
  %v444 = vand.u32 2147483647, %v434
  %vm445 = vcmp.eq.f32.partialorder %v444, 8.507059e+37
  %v446 = vand.u32 %v434, 2147483648
  %v447 = vor.u32 1.1754944e-38, %v446
  %v448 = vsel %vm445, %v447, %v443
  %v449 = vmul.f32 1.0, %v448
  %v450 = vtanh.pop %v430
  %v451 = vmul.f32 %v449, %v396
  %453 = vrot.lane.b32.xlu0 %v450, 64
  %v454 = vpop.permute.xlu0 %453
  %v456 = vmul.f32 %v449, %v454
  %458 = vrot.lane.b32.xlu0 %v456, 32
  %v459 = vpop.permute.xlu0 %458
  %v461 = vadd.f32 %v451, %v459
  %v462 = vtanh.pop %v461
  %464 = vrot.lane.b32.xlu0 %v462, 64
  %v465 = vpop.permute.xlu0 %464
  %v467 = vmul.f32 %v449, %v465
  %s468 = scalar_lea.vmem %s0, 56
  %v469 = vld [vmem:[%s468] sm:$0xff]
  %471 = vrot.lane.b32.xlu0 %v467, 32
  %v472 = vpop.permute.xlu0 %471
  %v473 = vsel %vm16, %v472, 0
  %475 = vmatpush.msra.mxu0 0.0
  %476 = vmatpush.msra.mxu0 0.0
  %477 = vmatpush.msra.mxu0 0.0
  %478 = vmatpush.msra.mxu0 0.0
  %479 = vmatpush.msra.mxu0 0.0
  %480 = vmatpush.msra.mxu0 0.0
  %481 = vmatpush.msra.mxu0 0.0
  %482 = vmatpush.msra.mxu0 0.0
  %483 = vmatpush.msra.mxu0 0.0
  %484 = vmatpush.msra.mxu0 0.0
  %485 = vmatpush.msra.mxu0 0.0
  %486 = vmatpush.msra.mxu0 0.0
  %487 = vmatpush.msra.mxu0 %v14
  %488 = vmatpush.msra.mxu0 %v13
  %489 = vmatpush.msra.mxu0 %v12
  %490 = vmatpush.msra.mxu0 %v11
  %491 = vmatmul.f32.gmra.mxu0 %v473
  %v492 = vpop.f32.mrf.mxu0
  %v493 = vadd.f32 0.0, %v492
  %494 = vdwg.mxu0
  %v495 = vadd.f32 %v469, %v493
  %v496 = vxor.u32 %v495, 2147483648
  %v497 = vmul.f32 %v496, 1.442695
  %v498 = vpow.pop %v497
  %v499 = vadd.f32 %v498, 1.0
  %v500 = vrcp.pop %v499
  %v501 = vmul.f32 %v499, %v500
  %v502 = vsub.f32 1.0, %v501
  %v503 = vmul.f32 %v500, %v502
  %v504 = vadd.f32 %v500, %v503
  %vm505 = vweird.f32 %v499
  %vm506 = vweird.f32 %v500
  %vm507 = vmor %vm505, %vm506
  %v508 = vsel %vm507, %v500, %v504
  %v509 = vand.u32 2147483647, %v499
  %vm510 = vcmp.eq.f32.partialorder %v509, 8.507059e+37
  %v511 = vand.u32 %v499, 2147483648
  %v512 = vor.u32 1.1754944e-38, %v511
  %v513 = vsel %vm510, %v512, %v508
  %v514 = vmul.f32 1.0, %v513
  %v515 = vtanh.pop %v495
  %v516 = vmul.f32 %v514, %v461
  %518 = vrot.lane.b32.xlu0 %v515, 64
  %v519 = vpop.permute.xlu0 %518
  %v521 = vmul.f32 %v514, %v519
  %523 = vrot.lane.b32.xlu0 %v521, 32
  %v524 = vpop.permute.xlu0 %523
  %v526 = vadd.f32 %v516, %v524
  %v527 = vtanh.pop %v526
  %529 = vrot.lane.b32.xlu0 %v527, 64
  %v530 = vpop.permute.xlu0 %529
  %v532 = vmul.f32 %v514, %v530
  %534 = vrot.lane.b32.xlu0 %v532, 32
  %v535 = vpop.permute.xlu0 %534
  %537 = vst.msk [vmem:[%s2] sm:$0xff] %vm16, %v535
  // Predicated region
  $region10: #{lstm_model_forward.1} parent=0 // pred_check
    _
  $region11: #{lstm_model_forward.1} parent=0 // pred_check_branch
    %539 = sbr.rel (0) target = $region13
  $region12: #{lstm_model_forward.1} parent=0 // pred_region
    _
  $region13: #{lstm_model_forward.1} parent=0 // pred_fallthru
    _
  // Predicated region
  $region14: #{lstm_model_forward.1} parent=0 // pred_check
    _
  $region15: #{lstm_model_forward.1} parent=0 // pred_check_branch
    %541 = sbr.rel (0) target = $region17
  $region16: #{lstm_model_forward.1} parent=0 // pred_region
    _
  $region17: #{lstm_model_forward.1} parent=0 // pred_fallthru
    _

</llo_original>
